<compile_context>
chip_gen: v5e
topology: v5e:2x2
jax: 0.10.0
libtpu: 0.0.40
codegen_flags: <defaults>
</compile_context>

<pallas_src>
import math

import jax
import jax.numpy as jnp
from jax.experimental import pallas as pl
from jax.experimental.pallas import tpu as pltpu


_MAX_TK = 2048  # max feature-dim block (columns) for the generic row-wise path


# ------------------------------- kernels ---------------------------------- #

def _packed_kernel(x_ref, shift_ref, sel_ref, o_ref):
    # x_ref:     (TM, 128) lane-dense tile: P original rows packed per row.
    # shift_ref: (1, 128)  shift tiled P times, f32, whole array in VMEM.
    # sel_ref:   (128, P)  block-diagonal 0/1 selector, f32, whole in VMEM.
    # o_ref:     (TM, P)   per-original-row scalar results, f32.
    x = x_ref[...].astype(jnp.float32)          # in-register upcast (bf16 ok)
    y = x * (0.5 * x + shift_ref[...])          # fused quad + shift term
    # Segmented per-row sum as one MXU matmul. HIGHEST precision recovers full
    # f32 accuracy; the extra MXU passes are hidden under the HBM DMA bound.
    o_ref[...] = jnp.dot(y, sel_ref[...],
                         precision=jax.lax.Precision.HIGHEST,
                         preferred_element_type=jnp.float32)
    # TODO(synk): a lane-dense (TM*P//128, 128) output slab would use unmasked
    # vsts, but needs an in-kernel sublane->lane reshape; skipped because the
    # output is only 1/D of the HBM traffic and the kernel stays DMA-bound.


def _make_rowwise_kernel(d_cols, tk, need_mask):
    """Generic path: grid = (row blocks, feature blocks); the output block is
    the resident accumulator across the (last, 'arbitrary') feature axis."""
    def kernel(x_ref, shift_ref, o_ref):
        k = pl.program_id(1)

        @pl.when(k == 0)
        def _():
            o_ref[...] = jnp.zeros_like(o_ref)

        x = x_ref[...].astype(jnp.float32)
        s = shift_ref[...].astype(jnp.float32)
        y = x * (0.5 * x + s)
        if need_mask:  # ragged last feature block: zero out-of-range columns
            col = k * tk + jax.lax.broadcasted_iota(jnp.int32, y.shape, 1)
            y = jnp.where(col < d_cols, y, 0.0)
        o_ref[...] += jnp.sum(y, axis=-1, keepdims=True)
    return kernel


# ------------------------------ tiling logic ------------------------------- #

def _tpu_budget():
    """(target input-block bytes, vmem_limit_bytes, tensorcores per chip)."""
    vmem_cap = 64 << 20                      # conservative default (v7x per-TC)
    try:
        vmem_cap = int(pltpu.get_tpu_info().vmem_capacity_bytes)
    except Exception:
        pass
    kind = ""
    try:
        kind = jax.devices()[0].device_kind.lower()
    except Exception:
        pass
    cores = 2 if any(t in kind for t in ("v7", "v4", "v5p")) else 1
    vmem_limit = min((vmem_cap * 3) // 4, 96 << 20)   # leave headroom
    # Double-buffered input (2x block) + resident output/constants must fit.
    target_block = max(4 << 20, min(16 << 20, vmem_limit // 4))
    return target_block, vmem_limit, cores


def _row_tiling(rows, row_bytes, *, target_bytes, cores, row_align=16):
    """Pick (row tile, steps): tile a multiple of row_align (or == rows), sized
    to ~target_bytes per input block; at least `cores` steps (a multiple of
    `cores`) when there is enough work, and NO forced split on 1-TC chips."""
    if rows <= row_align:
        return rows, 1                      # single full-extent block (legal)
    cap = max(row_align,
              (target_bytes // max(row_bytes, 1)) // row_align * row_align)
    steps = math.ceil(rows / cap)
    if cores > 1:
        steps = max(steps, min(cores, rows // row_align))
        steps = math.ceil(steps / cores) * cores
    if steps <= 1:
        return rows, 1
    tile = math.ceil(math.ceil(rows / steps) / row_align) * row_align
    steps = math.ceil(rows / tile)
    return tile, steps


# -------------------------------- wrapper ---------------------------------- #

def shifted_potential(x, shift):
    """ShiftedPotential.forward with a quadratic inner potential:
         out = 0.5*||x||^2 + (shift * x).sum(axis=1, keepdims=True) -> (N,1) f32
    x keeps its native dtype end-to-end; the f32 upcast happens in-register
    inside the kernel (no wrapper-side astype round-trip through HBM)."""
    N, D = x.shape
    assert shift.shape == (D,)
    shift = shift.astype(jnp.float32)            # (D,) tiny; negligible
    dsize = jnp.dtype(x.dtype).itemsize

    target_block, vmem_limit, cores = _tpu_budget()

    # --------------- lane-packed path: small D packs into 128 lanes --------- #
    if N > 0 and D < 128 and 128 % D == 0 and N % (128 // D) == 0:
        P = 128 // D                             # original rows per packed row
        rows, width = N // P, 128
        xp = x.reshape(rows, width)              # contiguous row-major: free

        shift_row = jnp.tile(shift, P).reshape(1, width)
        seg = jnp.arange(width, dtype=jnp.int32) // D
        sel = (seg[:, None] == jnp.arange(P, dtype=jnp.int32)[None, :]
               ).astype(jnp.float32)             # (128, P) block-diagonal ones

        tile, steps = _row_tiling(rows, width * dsize,
                                  target_bytes=target_block, cores=cores)

        out = pl.pallas_call(
            _packed_kernel,
            out_shape=jax.ShapeDtypeStruct((rows, P), jnp.float32),
            grid=(steps,),
            in_specs=[
                pl.BlockSpec((tile, width), lambda i: (i, 0)),
                # constants: whole array resident in VMEM, no per-step DMA
                pl.BlockSpec(memory_space=pltpu.MemorySpace.VMEM),
                pl.BlockSpec(memory_space=pltpu.MemorySpace.VMEM),
            ],
            out_specs=pl.BlockSpec((tile, P), lambda i: (i, 0)),
            compiler_params=pltpu.CompilerParams(
                dimension_semantics=("parallel",),
                vmem_limit_bytes=vmem_limit),
        )(xp, shift_row, sel)
        # (rows, P) -> (N, 1): free row-major reshape recovers original order.
        return out.reshape(N, 1)

    # ---------------- generic row-wise path (any N, any D) ------------------ #
    tk = D if D <= _MAX_TK else _MAX_TK
    k_steps = pl.cdiv(D, tk)
    need_mask = (D % tk) != 0                    # ragged K edge -> mask columns

    tile, steps = _row_tiling(N, tk * dsize,
                              target_bytes=target_block, cores=cores)

    out = pl.pallas_call(
        _make_rowwise_kernel(D, tk, need_mask),
        out_shape=jax.ShapeDtypeStruct((N, 1), jnp.float32),
        grid=(steps, k_steps),                   # reduction axis last
        in_specs=[
            pl.BlockSpec((tile, tk), lambda i, k: (i, k)),
            pl.BlockSpec((1, tk), lambda i, k: (0, k)),
        ],
        out_specs=pl.BlockSpec((tile, 1), lambda i, k: (i, 0)),
        compiler_params=pltpu.CompilerParams(
            dimension_semantics=("parallel", "arbitrary"),
            vmem_limit_bytes=vmem_limit),
    )(x, shift.reshape(1, D))
    return out


# --------------------------------- demo ------------------------------------ #

def _reference(x, shift):
    xf = x.astype(jnp.float32)
    sf = shift.astype(jnp.float32)
    return 0.5 * jnp.sum(xf * xf, axis=1, keepdims=True) + jnp.sum(
        sf[None, :] * xf, axis=1, keepdims=True)


if __name__ == "__main__":
    key = jax.random.PRNGKey(0)
    k1, k2, k3, k4, k5 = jax.random.split(key, 5)

    # 1) lane-packed path: small feature dim, f32 (N=256, D=16).
    N, D = 256, 16
    x = jax.random.normal(k1, (N, D), dtype=jnp.float32)
    shift = (jnp.arange(D, dtype=jnp.float32) - D / 2.0) * 0.1
    out = jax.block_until_ready(shifted_potential(x, shift))
    ref = _reference(x, shift)
    assert out.shape == (N, 1)
    assert jnp.allclose(out, ref, atol=1e-4, rtol=1e-4), "packed path mismatch"

    # 2) generic row-wise path (D does not pack into 128 lanes).
    N2, D2 = 64, 100
    x2 = jax.random.normal(k2, (N2, D2), dtype=jnp.float32)
    shift2 = jax.random.normal(k3, (D2,), dtype=jnp.float32)
    out2 = jax.block_until_ready(shifted_potential(x2, shift2))
    ref2 = _reference(x2, shift2)
    assert out2.shape == (N2, 1)
    assert jnp.allclose(out2, ref2, atol=1e-5, rtol=1e-5), "row-wise path mismatch"

    # 3) bf16 input: no wrapper-side upcast, cast happens in-register.
    N3, D3 = 128, 32
    x3 = jax.random.normal(k4, (N3, D3), dtype=jnp.float32).astype(jnp.bfloat16)
    shift3 = jax.random.normal(k5, (D3,), dtype=jnp.float32)
    out3 = jax.block_until_ready(shifted_potential(x3, shift3))
    ref3 = _reference(x3, shift3)
    assert out3.shape == (N3, 1)
    assert jnp.allclose(out3, ref3, atol=1e-3, rtol=1e-3), "bf16 path mismatch"

    print("KERNEL_OK")
</pallas_src>

<mosaic_0001>
module attributes {stable_mosaic.version = 11 : i64} {
  func.func @_packed_kernel(%arg0: i32, %arg1: memref<32x128xf32, #tpu.memory_space<vmem>>, %arg2: memref<1x128xf32, #tpu.memory_space<vmem>>, %arg3: memref<128x8xf32, #tpu.memory_space<vmem>>, %arg4: memref<32x8xf32, #tpu.memory_space<vmem>>) attributes {dimension_semantics = [#tpu.dimension_semantics<parallel>], iteration_bounds = array<i64: 1>, scalar_prefetch = 0 : i64, scratch_operands = 0 : i64, tpu.core_type = #tpu.core_type<tc>, window_params = [{transform_indices = @transform_0, window_bounds = array<i64: 32, 128>}, {pipeline_mode = #tpu.pipeline_mode<synchronous>, transform_indices = @transform_1, window_bounds = array<i64: 1, 128>}, {pipeline_mode = #tpu.pipeline_mode<synchronous>, transform_indices = @transform_2, window_bounds = array<i64: 128, 8>}, {transform_indices = @transform_3, window_bounds = array<i64: 32, 8>}]} {
    %c0 = arith.constant 0 : index
    %c0_0 = arith.constant 0 : index
    %0 = vector.load %arg1[%c0, %c0_0] : memref<32x128xf32, #tpu.memory_space<vmem>>, vector<32x128xf32>
    %cst = arith.constant 5.000000e-01 : f32
    %1 = vector.broadcast %cst : f32 to vector<32x128xf32>
    %2 = arith.mulf %1, %0 : vector<32x128xf32>
    %c0_1 = arith.constant 0 : index
    %c0_2 = arith.constant 0 : index
    %3 = vector.load %arg2[%c0_1, %c0_2] : memref<1x128xf32, #tpu.memory_space<vmem>>, vector<1x128xf32>
    %4 = vector.broadcast %3 : vector<1x128xf32> to vector<32x128xf32>
    %5 = arith.addf %2, %4 : vector<32x128xf32>
    %6 = arith.mulf %0, %5 : vector<32x128xf32>
    %c0_3 = arith.constant 0 : index
    %c0_4 = arith.constant 0 : index
    %7 = vector.load %arg3[%c0_3, %c0_4] : memref<128x8xf32, #tpu.memory_space<vmem>>, vector<128x8xf32>
    %cst_5 = arith.constant dense<0.000000e+00> : vector<32x8xf32>
    %8 = tpu.matmul %6, %7, %cst_5 {dimension_numbers = #tpu.dot_dimension_numbers<[1], [0], [0], [1], [0, 0, 1, 1], [], []>, precision = #tpu.contract_precision<fp32>} : vector<32x128xf32>, vector<128x8xf32>, vector<32x8xf32> -> vector<32x8xf32>
    %c0_6 = arith.constant 0 : index
    %c0_7 = arith.constant 0 : index
    %9 = vector.load %arg4[%c0_6, %c0_7] : memref<32x8xf32, #tpu.memory_space<vmem>>, vector<32x8xf32>
    tpu.vector_store %arg4[%c0_6, %c0_7], %8 {strides = array<i32>} : memref<32x8xf32, #tpu.memory_space<vmem>>, vector<32x8xf32>,
    return
  }
  func.func @transform_0(%arg0: i32) -> (i32, i32) {
    %c0_i32 = arith.constant 0 : i32
    %c0_i32_0 = arith.constant 0 : i32
    return %arg0, %c0_i32 : i32, i32
  }
  func.func @transform_1(%arg0: i32) -> (i32, i32) {
    %c0_i32 = arith.constant 0 : i32
    %c0_i32_0 = arith.constant 0 : i32
    %c0_i32_1 = arith.constant 0 : i32
    return %c0_i32, %c0_i32_0 : i32, i32
  }
  func.func @transform_2(%arg0: i32) -> (i32, i32) {
    %c0_i32 = arith.constant 0 : i32
    %c0_i32_0 = arith.constant 0 : i32
    %c0_i32_1 = arith.constant 0 : i32
    return %c0_i32, %c0_i32_0 : i32, i32
  }
  func.func @transform_3(%arg0: i32) -> (i32, i32) {
    %c0_i32 = arith.constant 0 : i32
    %c0_i32_0 = arith.constant 0 : i32
    return %arg0, %c0_i32 : i32, i32
  }
}

</mosaic_0001>

<llo_original>
// kernel: tpu_custom_call.1
$region0: #{tpu_custom_call.1}
  #allocation0 [shape = 'u32[]', space=smem, size = 0x4, offset = 0x4, fixed_abs, tag = 'smem constant byte address 0x4 - core index']
  #allocation1 [shape = 'u32[72,128]{1,0:T(1,128)}', space=vmem, size = 0x9000, scoped, tag = 'internal scratch']
  %s0 = inlined_call_operand.vmem [shape: f32[32,128], index: 0, kind: input, shape index: {}]
  %s1 = inlined_call_operand.vmem [shape: f32[1,128], index: 1, kind: input, shape index: {}]
  %s2 = inlined_call_operand.vmem [shape: f32[128,8], index: 2, kind: input, shape index: {}]
  %s3 = inlined_call_operand.vmem [shape: f32[32,8], index: 3, kind: output, shape index: {}]
  %s4 = sld [smem:[#allocation0]]
  $region22: #{tpu_custom_call.1} parent=0
    _
  %s6 = ssub.s32 1, %s4
  %s7 = scalar_select 0, %s6, %s4
  // Predicated region
  $region2: #{tpu_custom_call.1} parent=0 // pred_check
    _
  $region3: #{tpu_custom_call.1} parent=0 // pred_check_branch
    %9 = sbr.rel (0) target = $region5
  $region4: #{tpu_custom_call.1} parent=0 // pred_region
    _
  $region5: #{tpu_custom_call.1} parent=0 // pred_fallthru
    _
  // Predicated region
  $region6: #{tpu_custom_call.1} parent=0 // pred_check
    _
  $region7: #{tpu_custom_call.1} parent=0 // pred_check_branch
    %11 = sbr.rel (0) target = $region9
  $region8: #{tpu_custom_call.1} parent=0 // pred_region
    _
  $region9: #{tpu_custom_call.1} parent=0 // pred_fallthru
    _
  // Predicated region
  $region10: #{tpu_custom_call.1} parent=0 // pred_check
    _
  $region11: #{tpu_custom_call.1} parent=0 // pred_check_branch
    %13 = sbr.rel (0) target = $region13
  $region12: #{tpu_custom_call.1} parent=0 // pred_region
    _
  $region13: #{tpu_custom_call.1} parent=0 // pred_fallthru
    _
  %v14 = vld [vmem:[%s0] sm:$0xff]
  %v15 = vld [vmem:[%s0 + $0x8] sm:$0xff]
  %v16 = vld [vmem:[%s0 + $0x10] sm:$0xff]
  %v17 = vld [vmem:[%s0 + $0x18] sm:$0xff]
  %v18 = vmul.f32 %v14, 0.5
  %v19 = vmul.f32 %v15, 0.5
  %v20 = vmul.f32 %v16, 0.5
  %v21 = vmul.f32 %v17, 0.5
  %v22 = vld [vmem:[%s1] sm:$0x1]
  %v24 = vperm.slane %v22, 0
  %v26 = vadd.f32 %v18, %v24
  %v27 = vadd.f32 %v19, %v24
  %v28 = vadd.f32 %v20, %v24
  %v29 = vadd.f32 %v21, %v24
  %v30 = vmul.f32 %v14, %v26
  %v31 = vmul.f32 %v15, %v27
  %v32 = vmul.f32 %v16, %v28
  %v33 = vmul.f32 %v17, %v29
  %v34 = vld [vmem:[%s2] sm:$0xff]
  %v35 = vld [vmem:[%s2 + $0x8] sm:$0xff]
  %v36 = vld [vmem:[%s2 + $0x10] sm:$0xff]
  %v37 = vld [vmem:[%s2 + $0x18] sm:$0xff]
  %v38 = vld [vmem:[%s2 + $0x20] sm:$0xff]
  %v39 = vld [vmem:[%s2 + $0x28] sm:$0xff]
  %v40 = vld [vmem:[%s2 + $0x30] sm:$0xff]
  %v41 = vld [vmem:[%s2 + $0x38] sm:$0xff]
  %v42 = vld [vmem:[%s2 + $0x40] sm:$0xff]
  %v43 = vld [vmem:[%s2 + $0x48] sm:$0xff]
  %v44 = vld [vmem:[%s2 + $0x50] sm:$0xff]
  %v45 = vld [vmem:[%s2 + $0x58] sm:$0xff]
  %v46 = vld [vmem:[%s2 + $0x60] sm:$0xff]
  %v47 = vld [vmem:[%s2 + $0x68] sm:$0xff]
  %v48 = vld [vmem:[%s2 + $0x70] sm:$0xff]
  %v49 = vld [vmem:[%s2 + $0x78] sm:$0xff]
  %v50 = vand.u32 %v49, 4294901760
  %51 = vmatpush.msra.mxu0 %v50
  %v52 = vand.u32 %v48, 4294901760
  %53 = vmatpush.msra.mxu0 %v52
  %v54 = vand.u32 %v47, 4294901760
  %55 = vmatpush.msra.mxu0 %v54
  %v56 = vand.u32 %v46, 4294901760
  %57 = vmatpush.msra.mxu0 %v56
  %v58 = vand.u32 %v45, 4294901760
  %59 = vmatpush.msra.mxu0 %v58
  %v60 = vand.u32 %v44, 4294901760
  %61 = vmatpush.msra.mxu0 %v60
  %v62 = vand.u32 %v43, 4294901760
  %63 = vmatpush.msra.mxu0 %v62
  %v64 = vand.u32 %v42, 4294901760
  %65 = vmatpush.msra.mxu0 %v64
  %v66 = vand.u32 %v41, 4294901760
  %67 = vmatpush.msra.mxu0 %v66
  %v68 = vand.u32 %v40, 4294901760
  %69 = vmatpush.msra.mxu0 %v68
  %v70 = vand.u32 %v39, 4294901760
  %71 = vmatpush.msra.mxu0 %v70
  %v72 = vand.u32 %v38, 4294901760
  %73 = vmatpush.msra.mxu0 %v72
  %v74 = vand.u32 %v37, 4294901760
  %75 = vmatpush.msra.mxu0 %v74
  %v76 = vand.u32 %v36, 4294901760
  %77 = vmatpush.msra.mxu0 %v76
  %v78 = vand.u32 %v35, 4294901760
  %79 = vmatpush.msra.mxu0 %v78
  %v80 = vand.u32 %v34, 4294901760
  %81 = vmatpush.msra.mxu0 %v80
  %v82 = vand.u32 %v30, 4294901760
  %v83 = vsub.f32 %v30, %v82
  %v84 = vand.u32 %v83, 4294901760
  %v85 = vsub.f32 %v83, %v84
  %v86 = vand.u32 %v85, 4294901760
  %87 = vmatmul.f32.gmra.mxu0 %v86
  %v88 = vpop.f32.mrf.mxu0
  %v89 = vadd.f32 0.0, %v88
  %v90 = vand.u32 %v31, 4294901760
  %v91 = vsub.f32 %v31, %v90
  %v92 = vand.u32 %v91, 4294901760
  %v93 = vsub.f32 %v91, %v92
  %v94 = vand.u32 %v93, 4294901760
  %95 = vmatmul.f32.gmra.mxu0 %v94
  %v96 = vpop.f32.mrf.mxu0
  %v97 = vadd.f32 0.0, %v96
  %v98 = vand.u32 %v32, 4294901760
  %v99 = vsub.f32 %v32, %v98
  %v100 = vand.u32 %v99, 4294901760
  %v101 = vsub.f32 %v99, %v100
  %v102 = vand.u32 %v101, 4294901760
  %103 = vmatmul.f32.gmra.mxu0 %v102
  %v104 = vpop.f32.mrf.mxu0
  %v105 = vadd.f32 0.0, %v104
  %v106 = vand.u32 %v33, 4294901760
  %v107 = vsub.f32 %v33, %v106
  %v108 = vand.u32 %v107, 4294901760
  %v109 = vsub.f32 %v107, %v108
  %v110 = vand.u32 %v109, 4294901760
  %111 = vmatmul.f32.gmra.mxu0 %v110
  %v112 = vpop.f32.mrf.mxu0
  %v113 = vadd.f32 0.0, %v112
  %114 = vdwg.mxu0
  %v115 = vand.u32 %v49, 4294901760
  %v116 = vsub.f32 %v49, %v115
  %v117 = vand.u32 %v116, 4294901760
  %v118 = vsub.f32 %v116, %v117
  %v119 = vand.u32 %v118, 4294901760
  %120 = vmatpush.msra.mxu0 %v119
  %v121 = vand.u32 %v48, 4294901760
  %v122 = vsub.f32 %v48, %v121
  %v123 = vand.u32 %v122, 4294901760
  %v124 = vsub.f32 %v122, %v123
  %v125 = vand.u32 %v124, 4294901760
  %126 = vmatpush.msra.mxu0 %v125
  %v127 = vand.u32 %v47, 4294901760
  %v128 = vsub.f32 %v47, %v127
  %v129 = vand.u32 %v128, 4294901760
  %v130 = vsub.f32 %v128, %v129
  %v131 = vand.u32 %v130, 4294901760
  %132 = vmatpush.msra.mxu0 %v131
  %v133 = vand.u32 %v46, 4294901760
  %v134 = vsub.f32 %v46, %v133
  %v135 = vand.u32 %v134, 4294901760
  %v136 = vsub.f32 %v134, %v135
  %v137 = vand.u32 %v136, 4294901760
  %138 = vmatpush.msra.mxu0 %v137
  %v139 = vand.u32 %v45, 4294901760
  %v140 = vsub.f32 %v45, %v139
  %v141 = vand.u32 %v140, 4294901760
  %v142 = vsub.f32 %v140, %v141
  %v143 = vand.u32 %v142, 4294901760
  %144 = vmatpush.msra.mxu0 %v143
  %v145 = vand.u32 %v44, 4294901760
  %v146 = vsub.f32 %v44, %v145
  %v147 = vand.u32 %v146, 4294901760
  %v148 = vsub.f32 %v146, %v147
  %v149 = vand.u32 %v148, 4294901760
  %150 = vmatpush.msra.mxu0 %v149
  %v151 = vand.u32 %v43, 4294901760
  %v152 = vsub.f32 %v43, %v151
  %v153 = vand.u32 %v152, 4294901760
  %v154 = vsub.f32 %v152, %v153
  %v155 = vand.u32 %v154, 4294901760
  %156 = vmatpush.msra.mxu0 %v155
  %v157 = vand.u32 %v42, 4294901760
  %v158 = vsub.f32 %v42, %v157
  %v159 = vand.u32 %v158, 4294901760
  %v160 = vsub.f32 %v158, %v159
  %v161 = vand.u32 %v160, 4294901760
  %162 = vmatpush.msra.mxu0 %v161
  %v163 = vand.u32 %v41, 4294901760
  %v164 = vsub.f32 %v41, %v163
  %v165 = vand.u32 %v164, 4294901760
  %v166 = vsub.f32 %v164, %v165
  %v167 = vand.u32 %v166, 4294901760
  %168 = vmatpush.msra.mxu0 %v167
  %v169 = vand.u32 %v40, 4294901760
  %v170 = vsub.f32 %v40, %v169
  %v171 = vand.u32 %v170, 4294901760
  %v172 = vsub.f32 %v170, %v171
  %v173 = vand.u32 %v172, 4294901760
  %174 = vmatpush.msra.mxu0 %v173
  %v175 = vand.u32 %v39, 4294901760
  %v176 = vsub.f32 %v39, %v175
  %v177 = vand.u32 %v176, 4294901760
  %v178 = vsub.f32 %v176, %v177
  %v179 = vand.u32 %v178, 4294901760
  %180 = vmatpush.msra.mxu0 %v179
  %v181 = vand.u32 %v38, 4294901760
  %v182 = vsub.f32 %v38, %v181
  %v183 = vand.u32 %v182, 4294901760
  %v184 = vsub.f32 %v182, %v183
  %v185 = vand.u32 %v184, 4294901760
  %186 = vmatpush.msra.mxu0 %v185
  %v187 = vand.u32 %v37, 4294901760
  %v188 = vsub.f32 %v37, %v187
  %v189 = vand.u32 %v188, 4294901760
  %v190 = vsub.f32 %v188, %v189
  %v191 = vand.u32 %v190, 4294901760
  %192 = vmatpush.msra.mxu0 %v191
  %v193 = vand.u32 %v36, 4294901760
  %v194 = vsub.f32 %v36, %v193
  %v195 = vand.u32 %v194, 4294901760
  %v196 = vsub.f32 %v194, %v195
  %v197 = vand.u32 %v196, 4294901760
  %198 = vmatpush.msra.mxu0 %v197
  %v199 = vand.u32 %v35, 4294901760
  %v200 = vsub.f32 %v35, %v199
  %v201 = vand.u32 %v200, 4294901760
  %v202 = vsub.f32 %v200, %v201
  %v203 = vand.u32 %v202, 4294901760
  %204 = vmatpush.msra.mxu0 %v203
  %v205 = vand.u32 %v34, 4294901760
  %v206 = vsub.f32 %v34, %v205
  %v207 = vand.u32 %v206, 4294901760
  %v208 = vsub.f32 %v206, %v207
  %v209 = vand.u32 %v208, 4294901760
  %210 = vmatpush.msra.mxu0 %v209
  %v211 = vand.u32 %v30, 4294901760
  %212 = vmatmul.f32.gmra.mxu0 %v211
  %v213 = vpop.f32.mrf.mxu0
  %v214 = vadd.f32 %v89, %v213
  %v215 = vand.u32 %v31, 4294901760
  %216 = vmatmul.f32.gmra.mxu0 %v215
  %v217 = vpop.f32.mrf.mxu0
  %v218 = vadd.f32 %v97, %v217
  %v219 = vand.u32 %v32, 4294901760
  %220 = vmatmul.f32.gmra.mxu0 %v219
  %v221 = vpop.f32.mrf.mxu0
  %v222 = vadd.f32 %v105, %v221
  %v223 = vand.u32 %v33, 4294901760
  %224 = vmatmul.f32.gmra.mxu0 %v223
  %v225 = vpop.f32.mrf.mxu0
  %v226 = vadd.f32 %v113, %v225
  %227 = vdwg.mxu0
  %v228 = vand.u32 %v49, 4294901760
  %v229 = vsub.f32 %v49, %v228
  %230 = vmatpush.msra.mxu0 %v229
  %v231 = vand.u32 %v48, 4294901760
  %v232 = vsub.f32 %v48, %v231
  %233 = vmatpush.msra.mxu0 %v232
  %v234 = vand.u32 %v47, 4294901760
  %v235 = vsub.f32 %v47, %v234
  %236 = vmatpush.msra.mxu0 %v235
  %v237 = vand.u32 %v46, 4294901760
  %v238 = vsub.f32 %v46, %v237
  %239 = vmatpush.msra.mxu0 %v238
  %v240 = vand.u32 %v45, 4294901760
  %v241 = vsub.f32 %v45, %v240
  %242 = vmatpush.msra.mxu0 %v241
  %v243 = vand.u32 %v44, 4294901760
  %v244 = vsub.f32 %v44, %v243
  %245 = vmatpush.msra.mxu0 %v244
  %v246 = vand.u32 %v43, 4294901760
  %v247 = vsub.f32 %v43, %v246
  %248 = vmatpush.msra.mxu0 %v247
  %v249 = vand.u32 %v42, 4294901760
  %v250 = vsub.f32 %v42, %v249
  %251 = vmatpush.msra.mxu0 %v250
  %v252 = vand.u32 %v41, 4294901760
  %v253 = vsub.f32 %v41, %v252
  %254 = vmatpush.msra.mxu0 %v253
  %v255 = vand.u32 %v40, 4294901760
  %v256 = vsub.f32 %v40, %v255
  %257 = vmatpush.msra.mxu0 %v256
  %v258 = vand.u32 %v39, 4294901760
  %v259 = vsub.f32 %v39, %v258
  %260 = vmatpush.msra.mxu0 %v259
  %v261 = vand.u32 %v38, 4294901760
  %v262 = vsub.f32 %v38, %v261
  %263 = vmatpush.msra.mxu0 %v262
  %v264 = vand.u32 %v37, 4294901760
  %v265 = vsub.f32 %v37, %v264
  %266 = vmatpush.msra.mxu0 %v265
  %v267 = vand.u32 %v36, 4294901760
  %v268 = vsub.f32 %v36, %v267
  %269 = vmatpush.msra.mxu0 %v268
  %v270 = vand.u32 %v35, 4294901760
  %v271 = vsub.f32 %v35, %v270
  %272 = vmatpush.msra.mxu0 %v271
  %v273 = vand.u32 %v34, 4294901760
  %v274 = vsub.f32 %v34, %v273
  %275 = vmatpush.msra.mxu0 %v274
  %v276 = vand.u32 %v30, 4294901760
  %v277 = vsub.f32 %v30, %v276
  %278 = vmatmul.f32.gmra.mxu0 %v277
  %v279 = vpop.f32.mrf.mxu0
  %v280 = vadd.f32 %v214, %v279
  %v281 = vand.u32 %v31, 4294901760
  %v282 = vsub.f32 %v31, %v281
  %283 = vmatmul.f32.gmra.mxu0 %v282
  %v284 = vpop.f32.mrf.mxu0
  %v285 = vadd.f32 %v218, %v284
  %v286 = vand.u32 %v32, 4294901760
  %v287 = vsub.f32 %v32, %v286
  %288 = vmatmul.f32.gmra.mxu0 %v287
  %v289 = vpop.f32.mrf.mxu0
  %v290 = vadd.f32 %v222, %v289
  %v291 = vand.u32 %v33, 4294901760
  %v292 = vsub.f32 %v33, %v291
  %293 = vmatmul.f32.gmra.mxu0 %v292
  %v294 = vpop.f32.mrf.mxu0
  %v295 = vadd.f32 %v226, %v294
  %296 = vdwg.mxu0
  %v297 = vand.u32 %v49, 4294901760
  %298 = vmatpush.msra.mxu0 %v297
  %v299 = vand.u32 %v48, 4294901760
  %300 = vmatpush.msra.mxu0 %v299
  %v301 = vand.u32 %v47, 4294901760
  %302 = vmatpush.msra.mxu0 %v301
  %v303 = vand.u32 %v46, 4294901760
  %304 = vmatpush.msra.mxu0 %v303
  %v305 = vand.u32 %v45, 4294901760
  %306 = vmatpush.msra.mxu0 %v305
  %v307 = vand.u32 %v44, 4294901760
  %308 = vmatpush.msra.mxu0 %v307
  %v309 = vand.u32 %v43, 4294901760
  %310 = vmatpush.msra.mxu0 %v309
  %v311 = vand.u32 %v42, 4294901760
  %312 = vmatpush.msra.mxu0 %v311
  %v313 = vand.u32 %v41, 4294901760
  %314 = vmatpush.msra.mxu0 %v313
  %v315 = vand.u32 %v40, 4294901760
  %316 = vmatpush.msra.mxu0 %v315
  %v317 = vand.u32 %v39, 4294901760
  %318 = vmatpush.msra.mxu0 %v317
  %v319 = vand.u32 %v38, 4294901760
  %320 = vmatpush.msra.mxu0 %v319
  %v321 = vand.u32 %v37, 4294901760
  %322 = vmatpush.msra.mxu0 %v321
  %v323 = vand.u32 %v36, 4294901760
  %324 = vmatpush.msra.mxu0 %v323
  %v325 = vand.u32 %v35, 4294901760
  %326 = vmatpush.msra.mxu0 %v325
  %v327 = vand.u32 %v34, 4294901760
  %328 = vmatpush.msra.mxu0 %v327
  %v329 = vand.u32 %v30, 4294901760
  %v330 = vsub.f32 %v30, %v329
  %v331 = vand.u32 %v330, 4294901760
  %332 = vmatmul.f32.gmra.mxu0 %v331
  %v333 = vpop.f32.mrf.mxu0
  %v334 = vadd.f32 %v280, %v333
  %v335 = vand.u32 %v31, 4294901760
  %v336 = vsub.f32 %v31, %v335
  %v337 = vand.u32 %v336, 4294901760
  %338 = vmatmul.f32.gmra.mxu0 %v337
  %v339 = vpop.f32.mrf.mxu0
  %v340 = vadd.f32 %v285, %v339
  %v341 = vand.u32 %v32, 4294901760
  %v342 = vsub.f32 %v32, %v341
  %v343 = vand.u32 %v342, 4294901760
  %344 = vmatmul.f32.gmra.mxu0 %v343
  %v345 = vpop.f32.mrf.mxu0
  %v346 = vadd.f32 %v290, %v345
  %v347 = vand.u32 %v33, 4294901760
  %v348 = vsub.f32 %v33, %v347
  %v349 = vand.u32 %v348, 4294901760
  %350 = vmatmul.f32.gmra.mxu0 %v349
  %v351 = vpop.f32.mrf.mxu0
  %v352 = vadd.f32 %v295, %v351
  %353 = vdwg.mxu0
  %v354 = vand.u32 %v49, 4294901760
  %v355 = vsub.f32 %v49, %v354
  %v356 = vand.u32 %v355, 4294901760
  %357 = vmatpush.msra.mxu0 %v356
  %v358 = vand.u32 %v48, 4294901760
  %v359 = vsub.f32 %v48, %v358
  %v360 = vand.u32 %v359, 4294901760
  %361 = vmatpush.msra.mxu0 %v360
  %v362 = vand.u32 %v47, 4294901760
  %v363 = vsub.f32 %v47, %v362
  %v364 = vand.u32 %v363, 4294901760
  %365 = vmatpush.msra.mxu0 %v364
  %v366 = vand.u32 %v46, 4294901760
  %v367 = vsub.f32 %v46, %v366
  %v368 = vand.u32 %v367, 4294901760
  %369 = vmatpush.msra.mxu0 %v368
  %v370 = vand.u32 %v45, 4294901760
  %v371 = vsub.f32 %v45, %v370
  %v372 = vand.u32 %v371, 4294901760
  %373 = vmatpush.msra.mxu0 %v372
  %v374 = vand.u32 %v44, 4294901760
  %v375 = vsub.f32 %v44, %v374
  %v376 = vand.u32 %v375, 4294901760
  %377 = vmatpush.msra.mxu0 %v376
  %v378 = vand.u32 %v43, 4294901760
  %v379 = vsub.f32 %v43, %v378
  %v380 = vand.u32 %v379, 4294901760
  %381 = vmatpush.msra.mxu0 %v380
  %v382 = vand.u32 %v42, 4294901760
  %v383 = vsub.f32 %v42, %v382
  %v384 = vand.u32 %v383, 4294901760
  %385 = vmatpush.msra.mxu0 %v384
  %v386 = vand.u32 %v41, 4294901760
  %v387 = vsub.f32 %v41, %v386
  %v388 = vand.u32 %v387, 4294901760
  %389 = vmatpush.msra.mxu0 %v388
  %v390 = vand.u32 %v40, 4294901760
  %v391 = vsub.f32 %v40, %v390
  %v392 = vand.u32 %v391, 4294901760
  %393 = vmatpush.msra.mxu0 %v392
  %v394 = vand.u32 %v39, 4294901760
  %v395 = vsub.f32 %v39, %v394
  %v396 = vand.u32 %v395, 4294901760
  %397 = vmatpush.msra.mxu0 %v396
  %v398 = vand.u32 %v38, 4294901760
  %v399 = vsub.f32 %v38, %v398
  %v400 = vand.u32 %v399, 4294901760
  %401 = vmatpush.msra.mxu0 %v400
  %v402 = vand.u32 %v37, 4294901760
  %v403 = vsub.f32 %v37, %v402
  %v404 = vand.u32 %v403, 4294901760
  %405 = vmatpush.msra.mxu0 %v404
  %v406 = vand.u32 %v36, 4294901760
  %v407 = vsub.f32 %v36, %v406
  %v408 = vand.u32 %v407, 4294901760
  %409 = vmatpush.msra.mxu0 %v408
  %v410 = vand.u32 %v35, 4294901760
  %v411 = vsub.f32 %v35, %v410
  %v412 = vand.u32 %v411, 4294901760
  %413 = vmatpush.msra.mxu0 %v412
  %v414 = vand.u32 %v34, 4294901760
  %v415 = vsub.f32 %v34, %v414
  %v416 = vand.u32 %v415, 4294901760
  %417 = vmatpush.msra.mxu0 %v416
  %v418 = vand.u32 %v30, 4294901760
  %419 = vmatmul.f32.gmra.mxu0 %v418
  %v420 = vpop.f32.mrf.mxu0
  %v421 = vadd.f32 %v334, %v420
  %v422 = vand.u32 %v31, 4294901760
  %423 = vmatmul.f32.gmra.mxu0 %v422
  %v424 = vpop.f32.mrf.mxu0
  %v425 = vadd.f32 %v340, %v424
  %v426 = vand.u32 %v32, 4294901760
  %427 = vmatmul.f32.gmra.mxu0 %v426
  %v428 = vpop.f32.mrf.mxu0
  %v429 = vadd.f32 %v346, %v428
  %v430 = vand.u32 %v33, 4294901760
  %431 = vmatmul.f32.gmra.mxu0 %v430
  %v432 = vpop.f32.mrf.mxu0
  %v433 = vadd.f32 %v352, %v432
  %434 = vdwg.mxu0
  %v435 = vand.u32 %v49, 4294901760
  %436 = vmatpush.msra.mxu0 %v435
  %v437 = vand.u32 %v48, 4294901760
  %438 = vmatpush.msra.mxu0 %v437
  %v439 = vand.u32 %v47, 4294901760
  %440 = vmatpush.msra.mxu0 %v439
  %v441 = vand.u32 %v46, 4294901760
  %442 = vmatpush.msra.mxu0 %v441
  %v443 = vand.u32 %v45, 4294901760
  %444 = vmatpush.msra.mxu0 %v443
  %v445 = vand.u32 %v44, 4294901760
  %446 = vmatpush.msra.mxu0 %v445
  %v447 = vand.u32 %v43, 4294901760
  %448 = vmatpush.msra.mxu0 %v447
  %v449 = vand.u32 %v42, 4294901760
  %450 = vmatpush.msra.mxu0 %v449
  %v451 = vand.u32 %v41, 4294901760
  %452 = vmatpush.msra.mxu0 %v451
  %v453 = vand.u32 %v40, 4294901760
  %454 = vmatpush.msra.mxu0 %v453
  %v455 = vand.u32 %v39, 4294901760
  %456 = vmatpush.msra.mxu0 %v455
  %v457 = vand.u32 %v38, 4294901760
  %458 = vmatpush.msra.mxu0 %v457
  %v459 = vand.u32 %v37, 4294901760
  %460 = vmatpush.msra.mxu0 %v459
  %v461 = vand.u32 %v36, 4294901760
  %462 = vmatpush.msra.mxu0 %v461
  %v463 = vand.u32 %v35, 4294901760
  %464 = vmatpush.msra.mxu0 %v463
  %v465 = vand.u32 %v34, 4294901760
  %466 = vmatpush.msra.mxu0 %v465
  %v467 = vand.u32 %v30, 4294901760
  %468 = vmatmul.f32.gmra.mxu0 %v467
  %v469 = vpop.f32.mrf.mxu0
  %v470 = vadd.f32 %v421, %v469
  %v471 = vand.u32 %v31, 4294901760
  %472 = vmatmul.f32.gmra.mxu0 %v471
  %v473 = vpop.f32.mrf.mxu0
  %v474 = vadd.f32 %v425, %v473
  %v475 = vand.u32 %v32, 4294901760
  %476 = vmatmul.f32.gmra.mxu0 %v475
  %v477 = vpop.f32.mrf.mxu0
  %v478 = vadd.f32 %v429, %v477
  %v479 = vand.u32 %v33, 4294901760
  %480 = vmatmul.f32.gmra.mxu0 %v479
  %v481 = vpop.f32.mrf.mxu0
  %v482 = vadd.f32 %v433, %v481
  %483 = vdwg.mxu0
  %vm484 = vcmask 64512
  %485 = vst.msk [vmem:[%s3] sm:$0xff] %vm484, %v470
  %486 = vst.msk [vmem:[%s3 + $0x8] sm:$0xff] %vm484, %v474
  %487 = vst.msk [vmem:[%s3 + $0x10] sm:$0xff] %vm484, %v478
  %488 = vst.msk [vmem:[%s3 + $0x18] sm:$0xff] %vm484, %v482
  // Predicated region
  $region14: #{tpu_custom_call.1} parent=0 // pred_check
    _
  $region15: #{tpu_custom_call.1} parent=0 // pred_check_branch
    %490 = sbr.rel (0) target = $region17
  $region16: #{tpu_custom_call.1} parent=0 // pred_region
    _
  $region17: #{tpu_custom_call.1} parent=0 // pred_fallthru
    _
  // Predicated region
  $region18: #{tpu_custom_call.1} parent=0 // pred_check
    _
  $region19: #{tpu_custom_call.1} parent=0 // pred_check_branch
    %492 = sbr.rel (0) target = $region21
  $region20: #{tpu_custom_call.1} parent=0 // pred_region
    _
  $region21: #{tpu_custom_call.1} parent=0 // pred_fallthru
    _

</llo_original>
